<compile_context>
chip_gen: v7x
topology: tpu7x:2x2x1
jax: 0.10.0
libtpu: 0.0.40
codegen_flags: <defaults>
</compile_context>

<pallas_src>
import functools

import jax
import jax.numpy as jnp
from jax import lax
from jax.experimental import pallas as pl
from jax.experimental.pallas import tpu as pltpu

_LANES = 128


def _cdiv(a: int, b: int) -> int:
    return -(-a // b)


@functools.lru_cache(maxsize=None)
def _device_config():
    """(num_tensorcores, target_block_rows, is_v5e, is_v7) for the local TPU."""
    kind = ""
    try:
        kind = jax.devices()[0].device_kind.lower()
    except Exception:  # pragma: no cover - e.g. no devices during tracing tools
        pass
    is_v5e = ("v5e" in kind) or ("v5 lite" in kind) or ("v5lite" in kind)
    is_v7 = ("v7" in kind) or ("tpu7" in kind)
    # f32-equivalent rows per block: 8192 rows = 4 MiB (v5e), 16384 = 8 MiB.
    target_rows = 8192 if is_v5e else 16384
    num_cores = 2 if is_v7 else 1
    return num_cores, target_rows, is_v5e, is_v7


def _hinge_elem(x, mode: str):
    """Elementwise hinge term in f32 (used for the tiny <128-element tail)."""
    x32 = x.astype(jnp.float32)
    if mode == "d_real":
        return jnp.maximum(1.0 - x32, 0.0)
    if mode == "d_fake":
        return jnp.maximum(1.0 + x32, 0.0)
    return x32


def _hinge_sum_kernel(x_ref, out_ref, *, mode: str, rows: int, block_rows: int,
                      acc_rows: int, steps_per_core: int, need_mask: bool,
                      native_elemwise: bool):
    """Accumulate an (acc_rows, 128) f32 partial sum of f(x) per core."""
    s = pl.program_id(1)  # sequential reduction axis

    @pl.when(s == 0)
    def _init():
        out_ref[...] = jnp.zeros_like(out_ref)

    xv = x_ref[...]
    if not native_elemwise:
        xv = xv.astype(jnp.float32)
    if mode == "d_real":
        v = jnp.maximum(1.0 - xv, 0.0)
    elif mode == "d_fake":
        v = jnp.maximum(1.0 + xv, 0.0)
    else:  # generator loss path
        v = xv
    v = v.astype(jnp.float32)

    folds = block_rows // acc_rows

    def _accumulate(vals):
        # Fold (block_rows, 128) into (acc_rows, 128): pure VPU adds into
        # acc_rows//8 independent accumulator vregs per lane column (ILP).
        if folds == 1:
            out_ref[...] += vals
        else:
            out_ref[...] += vals.reshape(folds, acc_rows, _LANES).sum(axis=0)

    if not need_mask:
        _accumulate(v)
    else:
        # Only the last real (partial) block and clamped virtual blocks pay the
        # mask; steady-state blocks take the fast branch (HBM-bound).
        c = pl.program_id(0)
        row_start = (c * steps_per_core + s) * block_rows
        block_is_full = row_start + block_rows <= rows

        @pl.when(block_is_full)
        def _fast():
            _accumulate(v)

        @pl.when(jnp.logical_not(block_is_full))
        def _tail():
            local = lax.broadcasted_iota(jnp.int32, (block_rows, _LANES), 0)
            _accumulate(jnp.where(local < rows - row_start, v, 0.0))


def _partial_total(x_mat: jax.Array, mode: str) -> jax.Array:
    """Tiled Pallas reduction over a (rows, 128) matrix -> f32 scalar sum of f(x)."""
    rows = int(x_mat.shape[0])
    detected_cores, target_rows, is_v5e, _is_v7 = _device_config()

    if rows >= 8:
        block_rows = min(target_rows, (rows // 8) * 8)
    else:
        block_rows = rows  # full-extent block for tiny inputs
    total_blocks = _cdiv(rows, block_rows)

    num_cores = detected_cores if (detected_cores > 1 and total_blocks >= 2
                                   and block_rows % 64 == 0) else 1
    steps = _cdiv(total_blocks, num_cores)

    if block_rows % 64 == 0:
        acc_rows = 64           # wide accumulator: 8 vregs per lane column
    elif block_rows % 8 == 0:
        acc_rows = 8
    else:
        acc_rows = block_rows   # tiny input, single fold

    need_mask = (rows % block_rows != 0) or (total_blocks != num_cores * steps)
    native_elemwise = (x_mat.dtype == jnp.bfloat16) and not is_v5e

    # Explicit scoped-VMEM budget: double-buffered input + f32 intermediates.
    block_bytes = block_rows * _LANES * jnp.dtype(x_mat.dtype).itemsize
    f32_block_bytes = block_rows * _LANES * 4
    vmem_limit = int(max(32 << 20, 2 * block_bytes + 2 * f32_block_bytes + (4 << 20)))

    kernel = functools.partial(
        _hinge_sum_kernel, mode=mode, rows=rows, block_rows=block_rows,
        acc_rows=acc_rows, steps_per_core=steps, need_mask=need_mask,
        native_elemwise=native_elemwise)

    def in_map(c, s):
        # Clamp so no block is fully out of bounds; clamped (virtual) blocks
        # and the ragged tail block are zeroed in-kernel by the row mask.
        return (jnp.minimum(c * steps + s, total_blocks - 1), 0)

    def run(dim_sems):
        return pl.pallas_call(
            kernel,
            out_shape=jax.ShapeDtypeStruct((num_cores * acc_rows, _LANES),
                                           jnp.float32),
            grid_spec=pltpu.PrefetchScalarGridSpec(
                num_scalar_prefetch=0,
                grid=(num_cores, steps),
                in_specs=[pl.BlockSpec((block_rows, _LANES), in_map)],
                out_specs=pl.BlockSpec((acc_rows, _LANES), lambda c, s: (c, 0)),
            ),
            compiler_params=pltpu.CompilerParams(
                dimension_semantics=dim_sems,
                vmem_limit_bytes=vmem_limit),
        )(x_mat)

    if num_cores > 1:
        core_sem = getattr(pltpu, "CORE_PARALLEL", "parallel")
        arb_sem = getattr(pltpu, "ARBITRARY", "arbitrary")
        try:
            partials = run((core_sem, arb_sem))
        except Exception:
            # Fallback if explicit core-parallel semantics are rejected.
            partials = run(("parallel", "arbitrary"))
    else:
        partials = run(("arbitrary", "arbitrary"))

    # Tiny (<=128x128 f32) cross-lane / cross-core finish in plain JAX.
    return jnp.sum(partials)


def hinge_gan_loss(x: jax.Array,
                   is_real: bool,
                   is_disc: bool = False,
                   loss_weight: float = 1.0) -> jax.Array:
    """JAX/Pallas equivalent of HingeGANLoss.forward (returns f32 scalar)."""
    if is_disc:
        mode = "d_real" if is_real else "d_fake"
    else:
        assert is_real, "For G loss `is_real` should be True"
        mode = "g"

    n = x.size
    flat = jnp.ravel(x)             # native dtype; free reshape for contiguous x
    rows = n // _LANES
    rem = n - rows * _LANES

    total = jnp.float32(0.0)
    if rows > 0:
        body = flat if rem == 0 else lax.slice(flat, (0,), (rows * _LANES,))
        total = total + _partial_total(body.reshape(rows, _LANES), mode)
    if rem > 0:
        # Sub-128-element tail: negligible, handled in plain JAX (no HBM pad copy).
        tail = lax.slice(flat, (rows * _LANES,), (n,))
        total = total + jnp.sum(_hinge_elem(tail, mode))

    mean = total / jnp.float32(n)
    if is_disc:
        return mean
    return jnp.float32(loss_weight) * (-mean)


class HingeGANLoss:
    """Thin wrapper mirroring the PyTorch module interface."""

    def __init__(self, loss_weight: float) -> None:
        self.lamb_gan = float(loss_weight)

    def __call__(self, x, is_real: bool, is_disc: bool = False, **kwargs):
        return hinge_gan_loss(x, is_real, is_disc=is_disc,
                              loss_weight=self.lamb_gan)


if __name__ == "__main__":
    key = jax.random.PRNGKey(0)
    loss_weight = 0.5
    gan_loss = HingeGANLoss(loss_weight)

    # Discriminator-style NCHW output: (2, 4, 16, 16), f32.
    x = jax.random.normal(key, (2, 4, 16, 16), dtype=jnp.float32)

    d_real = gan_loss(x, is_real=True, is_disc=True)    # mean(relu(1 - x))
    d_fake = gan_loss(x, is_real=False, is_disc=True)   # mean(relu(1 + x))
    g_loss = gan_loss(x, is_real=True, is_disc=False)   # loss_weight * (-mean(x))
    jax.block_until_ready((d_real, d_fake, g_loss))

    ref_d_real = jnp.mean(jnp.maximum(1.0 - x, 0.0))
    ref_d_fake = jnp.mean(jnp.maximum(1.0 + x, 0.0))
    ref_g = loss_weight * (-jnp.mean(x))
    assert jnp.allclose(d_real, ref_d_real, rtol=1e-4, atol=1e-5), (d_real, ref_d_real)
    assert jnp.allclose(d_fake, ref_d_fake, rtol=1e-4, atol=1e-5), (d_fake, ref_d_fake)
    assert jnp.allclose(g_loss, ref_g, rtol=1e-4, atol=1e-5), (g_loss, ref_g)

    # Ragged shape: exercises the tail-only in-kernel row mask + <128-elem tail path.
    x_ragged = jax.random.normal(jax.random.PRNGKey(1), (3, 7, 11, 5),
                                 dtype=jnp.float32)
    d_ragged = gan_loss(x_ragged, is_real=True, is_disc=True)
    ref_ragged = jnp.mean(jnp.maximum(1.0 - x_ragged, 0.0))
    assert jnp.allclose(d_ragged, ref_ragged, rtol=1e-4, atol=1e-5), (d_ragged, ref_ragged)

    # Block-aligned medium shape: exercises the wide (64, 128) accumulator fold.
    x_med = jax.random.normal(jax.random.PRNGKey(2), (4, 4, 96, 96),
                              dtype=jnp.float32)
    g_med = gan_loss(x_med, is_real=True, is_disc=False)
    ref_med = loss_weight * (-jnp.mean(x_med))
    assert jnp.allclose(g_med, ref_med, rtol=1e-4, atol=1e-4), (g_med, ref_med)

    # bf16 input: hinge computed natively in bf16 on v6e/v7x, f32 accumulation.
    x_bf16 = x.astype(jnp.bfloat16)
    d_bf16 = gan_loss(x_bf16, is_real=False, is_disc=True)
    ref_bf16 = jnp.mean(jnp.maximum(1.0 + x_bf16.astype(jnp.float32), 0.0))
    assert jnp.allclose(d_bf16, ref_bf16, atol=2e-2), (d_bf16, ref_bf16)

    print("KERNEL_OK")
</pallas_src>

<mosaic_0001>
module attributes {stable_mosaic.version = 11 : i64} {
  func.func @_hinge_sum_kernel(%arg0: i32, %arg1: i32, %arg2: memref<16x128xf32, #tpu.memory_space<vmem>>, %arg3: memref<8x128xf32, #tpu.memory_space<vmem>>) attributes {dimension_semantics = [#tpu.dimension_semantics<arbitrary>, #tpu.dimension_semantics<arbitrary>], iteration_bounds = array<i64: 1, 1>, scalar_prefetch = 0 : i64, scratch_operands = 0 : i64, tpu.core_type = #tpu.core_type<tc>, window_params = [{transform_indices = @transform_0, window_bounds = array<i64: 16, 128>}, {transform_indices = @transform_1, window_bounds = array<i64: 8, 128>}]} {
    %c0_i32 = arith.constant 0 : i32
    %0 = arith.cmpi eq, %arg1, %c0_i32 : i32
    %1 = arith.extui %0 : i1 to i32
    %c0_i32_0 = arith.constant 0 : i32
    %2 = arith.cmpi ne, %1, %c0_i32_0 : i32
    scf.if %2 {
      %cst_8 = arith.constant 0.000000e+00 : f32
      %13 = vector.broadcast %cst_8 : f32 to vector<8x128xf32>
      %c0_9 = arith.constant 0 : index
      %c0_10 = arith.constant 0 : index
      %14 = vector.load %arg3[%c0_9, %c0_10] : memref<8x128xf32, #tpu.memory_space<vmem>>, vector<8x128xf32>
      tpu.vector_store %arg3[%c0_9, %c0_10], %13 {strides = array<i32>} : memref<8x128xf32, #tpu.memory_space<vmem>>, vector<8x128xf32>,
    } else {
    }
    %c0 = arith.constant 0 : index
    %c0_1 = arith.constant 0 : index
    %3 = vector.load %arg2[%c0, %c0_1] : memref<16x128xf32, #tpu.memory_space<vmem>>, vector<16x128xf32>
    %cst = arith.constant 1.000000e+00 : f32
    %4 = vector.broadcast %cst : f32 to vector<16x128xf32>
    %5 = arith.subf %4, %3 : vector<16x128xf32>
    %cst_2 = arith.constant 0.000000e+00 : f32
    %6 = vector.broadcast %cst_2 : f32 to vector<16x128xf32>
    %7 = arith.maximumf %5, %6 : vector<16x128xf32>
    %c0_3 = arith.constant 0 : index
    %c0_4 = arith.constant 0 : index
    %8 = vector.load %arg3[%c0_3, %c0_4] : memref<8x128xf32, #tpu.memory_space<vmem>>, vector<8x128xf32>
    %9 = vector.shape_cast %7 : vector<16x128xf32> to vector<2x8x128xf32>
    %cst_5 = arith.constant dense<0.000000e+00> : vector<8x128xf32>
    %10 = vector.multi_reduction <add>, %9, %cst_5 [0] : vector<2x8x128xf32> to vector<8x128xf32>
    %11 = arith.addf %8, %10 : vector<8x128xf32>
    %c0_6 = arith.constant 0 : index
    %c0_7 = arith.constant 0 : index
    %12 = vector.load %arg3[%c0_6, %c0_7] : memref<8x128xf32, #tpu.memory_space<vmem>>, vector<8x128xf32>
    tpu.vector_store %arg3[%c0_6, %c0_7], %11 {strides = array<i32>} : memref<8x128xf32, #tpu.memory_space<vmem>>, vector<8x128xf32>,
    return
  }
  func.func @transform_0(%arg0: i32, %arg1: i32) -> (i32, i32) {
    %c1_i32 = arith.constant 1 : i32
    %0 = arith.muli %arg0, %c1_i32 : i32
    %1 = arith.addi %0, %arg1 : i32
    %c0_i32 = arith.constant 0 : i32
    %2 = arith.minsi %1, %c0_i32 : i32
    %c0_i32_0 = arith.constant 0 : i32
    %c0_i32_1 = arith.constant 0 : i32
    return %2, %c0_i32_0 : i32, i32
  }
  func.func @transform_1(%arg0: i32, %arg1: i32) -> (i32, i32) {
    %c0_i32 = arith.constant 0 : i32
    %c0_i32_0 = arith.constant 0 : i32
    return %arg0, %c0_i32 : i32, i32
  }
}

</mosaic_0001>

<llo_original>
// kernel: tpu_custom_call.1
$region0: #{tpu_custom_call.1}
  #allocation0 [shape = 'u32[]', space=smem, size = 0x4, offset = 0x4, fixed_abs, tag = 'smem constant byte address 0x4 - core index']
  #allocation1 [shape = 'u32[144,128]{1,0:T(1,128)}', space=vmem, size = 0x12000, scoped, tag = 'internal scratch']
  %s0 = inlined_call_operand.hbm [shape: f32[16,128], index: 0, kind: input, shape index: {}]
  %s1 = inlined_call_operand.hbm [shape: f32[8,128], index: 1, kind: output, shape index: {}]
  %s2 = sld [smem:[#allocation0]]
  $region22: #{tpu_custom_call.1} parent=0
    _
  %s4 = ssub.s32 1, %s2
  %s5 = scalar_select 0, %s4, %s2
  $region1: #{tpu_custom_call.1} parent=0
    #allocation2 [shape = 'u8[8192]{0}', space=vmem, size = 0x2000, scoped, tag = 'input window, operand 0, single buffered']
    #allocation3 [shape = 's32[1]{0}', space=sflag, size = 0x4, scoped, tag = 'scoped memory for tpu_custom_call.1']
    #allocation4 [shape = 's32[1]{0}', space=sflag, size = 0x4, scoped, tag = 'scoped memory for tpu_custom_call.1']
    #allocation5 [shape = 'u8[4096]{0}', space=vmem, size = 0x1000, scoped, tag = 'output window, operand 0, single buffered']
    %6 = vsyncpa [#allocation3], 0
    %7 = vsyncpa [#allocation4], 0
    // Predicated region
    $region2: #{tpu_custom_call.1} parent=1 // pred_check
      _
    $region3: #{tpu_custom_call.1} parent=1 // pred_check_branch
      %9 = sbr.rel (0) target = $region5
    $region4: #{tpu_custom_call.1} parent=1 // pred_region
      %s10 = sadd.s32 0, 0
      %p11 = scmp.lt.s32.totalorder %s10, 0
      %s12 = scalar_select %p11, %s10, 0
      %s13 = smul.u32 2, %s12
      %s15 = ssub.s32 256, 256
      %16 = vsyncadd [#allocation3], %s15
      %s17 = smul.addr %s13, 128
      %s18 = scalar_lea.hbm %s0, %s17
      %s19 = sshll.u32 [#allocation2], 4
      %s20 = int_to_ptr.vmem [resolvable:$true] %s19
      %25 = dma.hbm_to_vmem [thread:$0]  %s18, 256, %s20, [#allocation3], 128, 128, 8
    $region5: #{tpu_custom_call.1} parent=1 // pred_fallthru
      _
    // Predicated region
    $region6: #{tpu_custom_call.1} parent=1 // pred_check
      _
    $region7: #{tpu_custom_call.1} parent=1 // pred_check_branch
      %27 = sbr.rel (0) target = $region9
    $region8: #{tpu_custom_call.1} parent=1 // pred_region
      %28 = dma.done [#allocation3], 256
    $region9: #{tpu_custom_call.1} parent=1 // pred_fallthru
      _
    %s29 = sadd.s32 0, 0
    %p30 = scmp.lt.s32.totalorder %s29, 0
    %s31 = scalar_select %p30, %s29, 0
    %s32 = smul.u32 2, %s31
    %p33 = scmp.eq.s32.totalorder 0, 0
    // Predicated region
    $region10: #{tpu_custom_call.1} parent=1 // pred_check
      %p34 = pneg %p33
    $region11: #{tpu_custom_call.1} parent=1 // pred_check_branch
      %36 = sbr.rel (%p34) target = $region13
    $region12: #{tpu_custom_call.1} parent=1 // pred_region
      %37 = vst [vmem:[#allocation5] sm:$0xff] 0.0
    $region13: #{tpu_custom_call.1} parent=1 // pred_fallthru
      _
    %v38 = vld [vmem:[#allocation2] sm:$0xff]
    %v39 = vld [vmem:[#allocation2 + $0x8] sm:$0xff]
    %v40 = vsub.f32 1.0, %v38
    %v41 = vsub.f32 1.0, %v39
    %v42 = vmax.f32 %v40, 0.0
    %v43 = vmax.f32 %v41, 0.0
    %v44 = vld [vmem:[#allocation5] sm:$0xff]
    %v45 = vadd.f32 %v42, %v43
    %v46 = vadd.f32 %v44, %v45
    %47 = vst [vmem:[#allocation5] sm:$0xff] %v46
    // Predicated region
    $region14: #{tpu_custom_call.1} parent=1 // pred_check
      _
    $region15: #{tpu_custom_call.1} parent=1 // pred_check_branch
      %49 = sbr.rel (0) target = $region17
    $region16: #{tpu_custom_call.1} parent=1 // pred_region
      %s51 = ssub.s32 128, 128
      %52 = vsyncadd [#allocation4], %s51
      %s54 = sshll.u32 [#allocation5], 4
      %s55 = int_to_ptr.vmem [resolvable:$true] %s54
      %57 = dma.vmem_to_hbm [thread:$0]  %s55, 128, %s1, [#allocation4]
    $region17: #{tpu_custom_call.1} parent=1 // pred_fallthru
      _
    // Predicated region
    $region18: #{tpu_custom_call.1} parent=1 // pred_check
      _
    $region19: #{tpu_custom_call.1} parent=1 // pred_check_branch
      %59 = sbr.rel (0) target = $region21
    $region20: #{tpu_custom_call.1} parent=1 // pred_region
      %60 = dma.done [#allocation4], 128
    $region21: #{tpu_custom_call.1} parent=1 // pred_fallthru
      _
    %61 = vsyncpa [#allocation3], 1
    %62 = vsyncpa [#allocation4], 1

</llo_original>
